<compile_context>
chip_gen: v5e
topology: v5e:2x2
jax: 0.10.0
libtpu: 0.0.40
codegen_flags: <defaults>
</compile_context>

<pallas_src>
import jax
import jax.numpy as jnp
from jax.experimental import pallas as pl
from jax.experimental.pallas import tpu as pltpu


# ----------------------------- budget planning ------------------------------

def _detect_vmem_capacity():
    """Per-TensorCore VMEM capacity in bytes (conservative fallback: 64 MiB)."""
    try:
        info = pltpu.get_tpu_info()
        for attr in ("vmem_capacity_bytes", "vmem_bytes", "vmem_capacity"):
            v = getattr(info, attr, None)
            if isinstance(v, int) and v > 0:
                return v
    except Exception:
        pass
    return 64 * 1024 * 1024


def _budgets():
    """(per-block byte budget, vmem_limit_bytes) -- generation aware."""
    cap = _detect_vmem_capacity()
    if cap >= 96 * 1024 * 1024:
        # v5e / v6e: 128 MiB VMEM per TC -> keep shapes on the one-pass path.
        return 64 * 1024 * 1024, 100 * 1024 * 1024
    # v7x: 64 MiB per TC -> leave headroom for Mosaic internal scratch.
    return 22 * 1024 * 1024, 48 * 1024 * 1024


def _onepass_block_bytes(n, c_blk, hw, itemsize):
    # x + y blocks double-buffered, plus up to 3 full-slab f32 working temps
    # (f32 cast of x, centered values, one spare) -- honest accounting for the
    # two-sweep variance path.
    blk = n * c_blk * hw
    return blk * itemsize * 4 + blk * 4 * 3


def _twopass_block_bytes(c_blk, hw, itemsize):
    blk = c_blk * hw
    return blk * itemsize * 4 + blk * 4 * 2


def _channel_candidates(c):
    """List of (c_pad, c_blk, n_slabs)."""
    cpad = ((c + 7) // 8) * 8
    cands = []
    if c != cpad:
        cands.append((c, c, 1))           # unpadded full-C single slab
    for cb in range(cpad, 0, -8):
        if cpad % cb == 0:
            cands.append((cpad, cb, cpad // cb))
    return cands


def _pick(fitting, c):
    """Prefer >=4 even slabs, then >=2 even, then >=2; single slab last."""
    if not fitting:
        return None

    def best(cands):
        return max(cands, key=lambda t: t[1])[:2] if cands else None

    for pred in (lambda t: t[2] >= 4 and t[2] % 2 == 0,
                 lambda t: t[2] >= 2 and t[2] % 2 == 0,
                 lambda t: t[2] >= 2):
        r = best([t for t in fitting if pred(t)])
        if r is not None:
            return r
    # Single-slab only remains (C <= 8 or nothing smaller exists): prefer the
    # unpadded full-C slab over a channel-padded one.
    return min(fitting, key=lambda t: (t[0], -t[1]))[:2]


def _plan(n, c, hw, itemsize, budget):
    cands = _channel_candidates(c)
    fits = [t for t in cands if _onepass_block_bytes(n, t[1], hw, itemsize) <= budget]
    choice = _pick(fits, c)
    if choice is not None:
        return ("onepass",) + choice
    fits = [t for t in cands if _twopass_block_bytes(t[1], hw, itemsize) <= budget]
    choice = _pick(fits, c)
    if choice is not None:
        return ("twopass",) + choice
    # TODO(synk): for truly huge H*W also tile the spatial (lane) axis in the
    # streaming path; here we just take the smallest channel slab.
    cpad, cblk = min(cands, key=lambda t: t[1])[:2]
    return "twopass", cpad, cblk


# --------------------------------- kernels ----------------------------------

def _bn_onepass_kernel(eps, inv_m, pad_count):
    """Single pass: slab (N, C_BLK, HWp) resident; two-sweep stats + normalize."""

    def kernel(x_ref, w_ref, b_ref, o_ref):
        xf = x_ref[...].astype(jnp.float32)               # (N, C_BLK, HWp)
        s = jnp.sum(jnp.sum(xf, axis=2, keepdims=True), axis=0, keepdims=True)
        mean = s * inv_m                                   # (1, C_BLK, 1)
        d = xf - mean
        ssq = jnp.sum(jnp.sum(d * d, axis=2, keepdims=True), axis=0, keepdims=True)
        if pad_count:
            # Zero-padded HW columns contributed (0 - mean)^2 each; remove them.
            ssq = ssq - pad_count * (mean * mean)
        var = jnp.maximum(ssq * inv_m, 0.0)                # biased var, clamped
        inv_std = jax.lax.rsqrt(var + eps)
        scale = w_ref[...] * inv_std                       # folded affine
        shift = b_ref[...] - mean * scale
        # Compute in f32, cast only at the store (matches PyTorch fp32 normalize).
        o_ref[...] = (xf * scale + shift).astype(o_ref.dtype)

    return kernel


def _bn_stats_scale_kernel(eps, inv_m):
    """Streaming pass 1: accumulate per-channel sums; fused scale/shift epilogue."""

    def kernel(x_ref, w_ref, b_ref, scale_ref, shift_ref, s_acc, sq_acc):
        ni = pl.program_id(1)

        @pl.when(ni == 0)
        def _():
            s_acc[...] = jnp.zeros_like(s_acc)
            sq_acc[...] = jnp.zeros_like(sq_acc)

        xf = x_ref[...].astype(jnp.float32)                # (1, C_BLK, HWp)
        s_acc[...] += jnp.sum(jnp.sum(xf, axis=2, keepdims=True),
                              axis=0, keepdims=True)
        sq_acc[...] += jnp.sum(jnp.sum(xf * xf, axis=2, keepdims=True),
                               axis=0, keepdims=True)

        @pl.when(ni == pl.num_programs(1) - 1)
        def _():
            # Epilogue fused into the stats kernel: no host-side XLA dispatch
            # and no stat-tensor HBM round trip between the two passes.
            mean = s_acc[...] * inv_m
            var = jnp.maximum(sq_acc[...] * inv_m - mean * mean, 0.0)
            inv_std = jax.lax.rsqrt(var + eps)
            scale = w_ref[...] * inv_std
            shift = b_ref[...] - mean * scale
            scale_ref[...] = scale
            shift_ref[...] = shift

    return kernel


def _bn_norm_kernel(x_ref, scale_ref, shift_ref, o_ref):
    """Streaming pass 2: y = x * scale + shift (f32 compute, cast at store)."""
    xf = x_ref[...].astype(jnp.float32)
    o_ref[...] = (xf * scale_ref[...] + shift_ref[...]).astype(o_ref.dtype)


# --------------------------------- wrapper ----------------------------------

def meta_batch_norm2d(x, weight, bias, eps=1e-5, max_block_bytes=None,
                      vmem_limit_bytes=None):
    """Training-mode batch norm. x: (N, C, H, W); weight, bias: (C,)."""
    n, c, h, w = x.shape
    hw = h * w

    block_budget, vmem_limit = _budgets()
    if max_block_bytes is not None:
        block_budget = max_block_bytes
    if vmem_limit_bytes is not None:
        vmem_limit = vmem_limit_bytes

    # Lane densification: small-spatial layers get HW zero-padded to a
    # multiple of 128 so vector stores are unmasked / DMA rows are dense.
    if hw < 512 and hw % 128 != 0:
        hw_pad = ((hw + 127) // 128) * 128
    else:
        hw_pad = hw

    mode, c_pad, c_blk = _plan(n, c, hw_pad, x.dtype.itemsize, block_budget)
    n_cblocks = c_pad // c_blk
    inv_m = 1.0 / float(n * hw)                  # true element count per channel
    pad_count = float(n * (hw_pad - hw))         # zero-pad elements per channel

    # Free, contiguous reshape (no transpose): channels on sublanes, spatial on lanes.
    x3 = x.reshape(n, c, hw)
    wv = weight.astype(jnp.float32)
    bv = bias.astype(jnp.float32)
    if c_pad != c or hw_pad != hw:
        x3 = jnp.pad(x3, ((0, 0), (0, c_pad - c), (0, hw_pad - hw)))
    if c_pad != c:
        wv = jnp.pad(wv, (0, c_pad - c), constant_values=1.0)
        bv = jnp.pad(bv, (0, c_pad - c))
    w3 = wv.reshape(1, c_pad, 1)
    b3 = bv.reshape(1, c_pad, 1)

    if mode == "onepass":
        y3 = pl.pallas_call(
            _bn_onepass_kernel(float(eps), inv_m, pad_count),
            out_shape=jax.ShapeDtypeStruct((n, c_pad, hw_pad), x.dtype),
            grid=(n_cblocks,),
            in_specs=[
                pl.BlockSpec((n, c_blk, hw_pad), lambda ci: (0, ci, 0)),
                pl.BlockSpec((1, c_blk, 1), lambda ci: (0, ci, 0)),
                pl.BlockSpec((1, c_blk, 1), lambda ci: (0, ci, 0)),
            ],
            out_specs=pl.BlockSpec((n, c_blk, hw_pad), lambda ci: (0, ci, 0)),
            compiler_params=pltpu.CompilerParams(
                dimension_semantics=("parallel",),
                vmem_limit_bytes=vmem_limit,
            ),
        )(x3, w3, b3)
    else:
        # Pass 1: per-channel sums streamed over the batch axis, with the
        # scale/shift epilogue fused into the final batch step.
        scale3, shift3 = pl.pallas_call(
            _bn_stats_scale_kernel(float(eps), inv_m),
            out_shape=(
                jax.ShapeDtypeStruct((1, c_pad, 1), jnp.float32),
                jax.ShapeDtypeStruct((1, c_pad, 1), jnp.float32),
            ),
            grid=(n_cblocks, n),
            in_specs=[
                pl.BlockSpec((1, c_blk, hw_pad), lambda ci, ni: (ni, ci, 0)),
                pl.BlockSpec((1, c_blk, 1), lambda ci, ni: (0, ci, 0)),
                pl.BlockSpec((1, c_blk, 1), lambda ci, ni: (0, ci, 0)),
            ],
            out_specs=(
                pl.BlockSpec((1, c_blk, 1), lambda ci, ni: (0, ci, 0)),
                pl.BlockSpec((1, c_blk, 1), lambda ci, ni: (0, ci, 0)),
            ),
            scratch_shapes=[
                pltpu.VMEM((1, c_blk, 1), jnp.float32),
                pltpu.VMEM((1, c_blk, 1), jnp.float32),
            ],
            compiler_params=pltpu.CompilerParams(
                dimension_semantics=("parallel", "arbitrary"),
                vmem_limit_bytes=vmem_limit,
            ),
        )(x3, w3, b3)

        # Pass 2: lane-dense normalize.
        y3 = pl.pallas_call(
            _bn_norm_kernel,
            out_shape=jax.ShapeDtypeStruct((n, c_pad, hw_pad), x.dtype),
            grid=(n_cblocks, n),
            in_specs=[
                pl.BlockSpec((1, c_blk, hw_pad), lambda ci, ni: (ni, ci, 0)),
                pl.BlockSpec((1, c_blk, 1), lambda ci, ni: (0, ci, 0)),
                pl.BlockSpec((1, c_blk, 1), lambda ci, ni: (0, ci, 0)),
            ],
            out_specs=pl.BlockSpec((1, c_blk, hw_pad), lambda ci, ni: (ni, ci, 0)),
            compiler_params=pltpu.CompilerParams(
                dimension_semantics=("parallel", "parallel"),
                vmem_limit_bytes=vmem_limit,
            ),
        )(x3, scale3, shift3)

    if c_pad != c or hw_pad != hw:
        y3 = y3[:, :c, :hw]
    return y3.reshape(n, c, h, w)


# -------------------------------- reference ---------------------------------

def _reference(x, weight, bias, eps=1e-5):
    xf = x.astype(jnp.float32)
    mean = jnp.mean(xf, axis=(0, 2, 3), keepdims=True)
    var = jnp.mean((xf - mean) ** 2, axis=(0, 2, 3), keepdims=True)
    w = weight.astype(jnp.float32).reshape(1, -1, 1, 1)
    b = bias.astype(jnp.float32).reshape(1, -1, 1, 1)
    return (xf - mean) / jnp.sqrt(var + eps) * w + b


if __name__ == "__main__":
    eps = 1e-5

    # Test A: module-consistent small shape (N=2, C=4, 16x16), default plan
    # (C <= 8 -> single unpadded slab; HW=256 already lane-aligned).
    kx, kw, kb = jax.random.split(jax.random.PRNGKey(0), 3)
    N, C, H, W = 2, 4, 16, 16
    x = jax.random.normal(kx, (N, C, H, W), dtype=jnp.float32)
    weight = 1.0 + 0.1 * jax.random.normal(kw, (C,), dtype=jnp.float32)
    bias = 0.1 * jax.random.normal(kb, (C,), dtype=jnp.float32)
    out = jax.block_until_ready(meta_batch_norm2d(x, weight, bias, eps=eps))
    assert out.shape == (N, C, H, W)
    assert jnp.allclose(out, _reference(x, weight, bias, eps=eps), atol=1e-4, rtol=1e-4)

    # Test B: C=12 with a budget that forces a padded 2-slab one-pass plan.
    C2 = 12
    kx2, kw2, kb2 = jax.random.split(jax.random.PRNGKey(1), 3)
    x2 = jax.random.normal(kx2, (N, C2, H, W), dtype=jnp.float32)
    w2 = 1.0 + 0.1 * jax.random.normal(kw2, (C2,), dtype=jnp.float32)
    b2 = 0.1 * jax.random.normal(kb2, (C2,), dtype=jnp.float32)
    small_budget = _onepass_block_bytes(N, 8, H * W, 4)
    out2 = jax.block_until_ready(
        meta_batch_norm2d(x2, w2, b2, eps=eps, max_block_bytes=small_budget))
    assert jnp.allclose(out2, _reference(x2, w2, b2, eps=eps), atol=1e-4, rtol=1e-4)

    # Test C: tiny budget -> two-pass streaming fallback with fused epilogue.
    out3 = jax.block_until_ready(
        meta_batch_norm2d(x2, w2, b2, eps=eps, max_block_bytes=1))
    assert jnp.allclose(out3, _reference(x2, w2, b2, eps=eps), atol=1e-4, rtol=1e-4)

    # Test D: C=32 -> planner should pick a 4-slab grid (pipelined / megacore).
    C3 = 32
    kx3, kw3, kb3 = jax.random.split(jax.random.PRNGKey(2), 3)
    x3_ = jax.random.normal(kx3, (N, C3, H, W), dtype=jnp.float32)
    w3_ = 1.0 + 0.1 * jax.random.normal(kw3, (C3,), dtype=jnp.float32)
    b3_ = 0.1 * jax.random.normal(kb3, (C3,), dtype=jnp.float32)
    out4 = jax.block_until_ready(meta_batch_norm2d(x3_, w3_, b3_, eps=eps))
    assert jnp.allclose(out4, _reference(x3_, w3_, b3_, eps=eps), atol=1e-4, rtol=1e-4)

    # Test E: small-spatial layer (7x7) -> HW lane-padded to 128 with exact
    # pad-count correction in the stats.
    C4, H4, W4 = 16, 7, 7
    kx4, kw4, kb4 = jax.random.split(jax.random.PRNGKey(3), 3)
    x4 = 2.0 + jax.random.normal(kx4, (N, C4, H4, W4), dtype=jnp.float32)
    w4 = 1.0 + 0.1 * jax.random.normal(kw4, (C4,), dtype=jnp.float32)
    b4 = 0.1 * jax.random.normal(kb4, (C4,), dtype=jnp.float32)
    out5 = jax.block_until_ready(meta_batch_norm2d(x4, w4, b4, eps=eps))
    assert jnp.allclose(out5, _reference(x4, w4, b4, eps=eps), atol=1e-4, rtol=1e-4)

    # Test F: bf16 input, f32 compute, cast only at store.
    x5 = x.astype(jnp.bfloat16)
    out6 = jax.block_until_ready(meta_batch_norm2d(x5, weight, bias, eps=eps))
    ref6 = _reference(x5, weight, bias, eps=eps).astype(jnp.bfloat16)
    assert jnp.max(jnp.abs(out6.astype(jnp.float32) - ref6.astype(jnp.float32))) < 5e-2

    print("KERNEL_OK")
</pallas_src>

<mosaic_0001>
module attributes {stable_mosaic.version = 11 : i64} {
  func.func @kernel(%arg0: i32, %arg1: memref<2x4x256xf32, #tpu.memory_space<vmem>>, %arg2: memref<1x4x1xf32, #tpu.memory_space<vmem>>, %arg3: memref<1x4x1xf32, #tpu.memory_space<vmem>>, %arg4: memref<2x4x256xf32, #tpu.memory_space<vmem>>) attributes {dimension_semantics = [#tpu.dimension_semantics<parallel>], iteration_bounds = array<i64: 1>, scalar_prefetch = 0 : i64, scratch_operands = 0 : i64, tpu.core_type = #tpu.core_type<tc>, window_params = [{transform_indices = @transform_0, window_bounds = array<i64: 2, 4, 256>}, {transform_indices = @transform_1, window_bounds = array<i64: 1, 4, 1>}, {transform_indices = @transform_2, window_bounds = array<i64: 1, 4, 1>}, {transform_indices = @transform_3, window_bounds = array<i64: 2, 4, 256>}]} {
    %c0 = arith.constant 0 : index
    %c0_0 = arith.constant 0 : index
    %c0_1 = arith.constant 0 : index
    %0 = vector.load %arg1[%c0, %c0_0, %c0_1] : memref<2x4x256xf32, #tpu.memory_space<vmem>>, vector<2x4x256xf32>
    %cst = arith.constant dense<0.000000e+00> : vector<2x4xf32>
    %1 = vector.multi_reduction <add>, %0, %cst [2] : vector<2x4x256xf32> to vector<2x4xf32>
    %2 = vector.shape_cast %1 : vector<2x4xf32> to vector<2x4x1xf32>
    %cst_2 = arith.constant dense<0.000000e+00> : vector<4x1xf32>
    %3 = vector.multi_reduction <add>, %2, %cst_2 [0] : vector<2x4x1xf32> to vector<4x1xf32>
    %4 = vector.shape_cast %3 : vector<4x1xf32> to vector<1x4x1xf32>
    %cst_3 = arith.constant 0.001953125 : f32
    %5 = vector.broadcast %cst_3 : f32 to vector<1x4x1xf32>
    %6 = arith.mulf %4, %5 : vector<1x4x1xf32>
    %7 = vector.broadcast %6 : vector<1x4x1xf32> to vector<2x4x256xf32>
    %8 = arith.subf %0, %7 : vector<2x4x256xf32>
    %9 = arith.mulf %8, %8 : vector<2x4x256xf32>
    %cst_4 = arith.constant dense<0.000000e+00> : vector<2x4xf32>
    %10 = vector.multi_reduction <add>, %9, %cst_4 [2] : vector<2x4x256xf32> to vector<2x4xf32>
    %11 = vector.shape_cast %10 : vector<2x4xf32> to vector<2x4x1xf32>
    %cst_5 = arith.constant dense<0.000000e+00> : vector<4x1xf32>
    %12 = vector.multi_reduction <add>, %11, %cst_5 [0] : vector<2x4x1xf32> to vector<4x1xf32>
    %13 = vector.shape_cast %12 : vector<4x1xf32> to vector<1x4x1xf32>
    %cst_6 = arith.constant 0.001953125 : f32
    %14 = vector.broadcast %cst_6 : f32 to vector<1x4x1xf32>
    %15 = arith.mulf %13, %14 : vector<1x4x1xf32>
    %cst_7 = arith.constant 0.000000e+00 : f32
    %16 = vector.broadcast %cst_7 : f32 to vector<1x4x1xf32>
    %17 = arith.maximumf %15, %16 : vector<1x4x1xf32>
    %cst_8 = arith.constant 9.99999974E-6 : f32
    %18 = vector.broadcast %cst_8 : f32 to vector<1x4x1xf32>
    %19 = arith.addf %17, %18 : vector<1x4x1xf32>
    %20 = math.rsqrt %19 : vector<1x4x1xf32>
    %c0_9 = arith.constant 0 : index
    %c0_10 = arith.constant 0 : index
    %c0_11 = arith.constant 0 : index
    %21 = vector.load %arg2[%c0_9, %c0_10, %c0_11] : memref<1x4x1xf32, #tpu.memory_space<vmem>>, vector<1x4x1xf32>
    %22 = arith.mulf %21, %20 : vector<1x4x1xf32>
    %c0_12 = arith.constant 0 : index
    %c0_13 = arith.constant 0 : index
    %c0_14 = arith.constant 0 : index
    %23 = vector.load %arg3[%c0_12, %c0_13, %c0_14] : memref<1x4x1xf32, #tpu.memory_space<vmem>>, vector<1x4x1xf32>
    %24 = arith.mulf %6, %22 : vector<1x4x1xf32>
    %25 = arith.subf %23, %24 : vector<1x4x1xf32>
    %26 = vector.broadcast %22 : vector<1x4x1xf32> to vector<2x4x256xf32>
    %27 = arith.mulf %0, %26 : vector<2x4x256xf32>
    %28 = vector.broadcast %25 : vector<1x4x1xf32> to vector<2x4x256xf32>
    %29 = arith.addf %27, %28 : vector<2x4x256xf32>
    %c0_15 = arith.constant 0 : index
    %c0_16 = arith.constant 0 : index
    %c0_17 = arith.constant 0 : index
    %30 = vector.load %arg4[%c0_15, %c0_16, %c0_17] : memref<2x4x256xf32, #tpu.memory_space<vmem>>, vector<2x4x256xf32>
    tpu.vector_store %arg4[%c0_15, %c0_16, %c0_17], %29 {strides = array<i32>} : memref<2x4x256xf32, #tpu.memory_space<vmem>>, vector<2x4x256xf32>,
    return
  }
  func.func @transform_0(%arg0: i32) -> (i32, i32, i32) {
    %c0_i32 = arith.constant 0 : i32
    %c0_i32_0 = arith.constant 0 : i32
    %c0_i32_1 = arith.constant 0 : i32
    return %c0_i32, %arg0, %c0_i32_0 : i32, i32, i32
  }
  func.func @transform_1(%arg0: i32) -> (i32, i32, i32) {
    %c0_i32 = arith.constant 0 : i32
    %c0_i32_0 = arith.constant 0 : i32
    %c0_i32_1 = arith.constant 0 : i32
    return %c0_i32, %arg0, %c0_i32_0 : i32, i32, i32
  }
  func.func @transform_2(%arg0: i32) -> (i32, i32, i32) {
    %c0_i32 = arith.constant 0 : i32
    %c0_i32_0 = arith.constant 0 : i32
    %c0_i32_1 = arith.constant 0 : i32
    return %c0_i32, %arg0, %c0_i32_0 : i32, i32, i32
  }
  func.func @transform_3(%arg0: i32) -> (i32, i32, i32) {
    %c0_i32 = arith.constant 0 : i32
    %c0_i32_0 = arith.constant 0 : i32
    %c0_i32_1 = arith.constant 0 : i32
    return %c0_i32, %arg0, %c0_i32_0 : i32, i32, i32
  }
}

</mosaic_0001>

<llo_original>
// kernel: tpu_custom_call.1
$region0: #{tpu_custom_call.1}
  #allocation0 [shape = 'u32[]', space=smem, size = 0x4, offset = 0x4, fixed_abs, tag = 'smem constant byte address 0x4 - core index']
  #allocation1 [shape = 'u32[72,128]{1,0:T(1,128)}', space=vmem, size = 0x9000, scoped, tag = 'internal scratch']
  %s0 = inlined_call_operand.hbm [shape: f32[2,4,256], index: 0, kind: input, shape index: {}]
  %s1 = inlined_call_operand.vmem [shape: f32[1,4,1], index: 1, kind: input, shape index: {}]
  %s2 = inlined_call_operand.vmem [shape: f32[1,4,1], index: 2, kind: input, shape index: {}]
  %s3 = inlined_call_operand.hbm [shape: f32[2,4,256], index: 3, kind: output, shape index: {}]
  %s4 = sld [smem:[#allocation0]]
  $region26: #{tpu_custom_call.1} parent=0
    _
  %s6 = ssub.s32 1, %s4
  %s7 = scalar_select 0, %s6, %s4
  $region1: #{tpu_custom_call.1} parent=0
    #allocation2 [shape = 'u8[8192]{0}', space=vmem, size = 0x2000, scoped, tag = 'input window, operand 0, single buffered']
    #allocation3 [shape = 's32[1]{0}', space=sflag, size = 0x4, scoped, tag = 'scoped memory for tpu_custom_call.1']
    #allocation4 [shape = 's32[1]{0}', space=sflag, size = 0x4, scoped, tag = 'scoped memory for tpu_custom_call.1']
    #allocation5 [shape = 'u8[8192]{0}', space=vmem, size = 0x2000, scoped, tag = 'output window, operand 0, single buffered']
    %8 = vsyncpa [#allocation3], 0
    %9 = vsyncpa [#allocation4], 0
    // Predicated region
    $region2: #{tpu_custom_call.1} parent=1 // pred_check
      _
    $region3: #{tpu_custom_call.1} parent=1 // pred_check_branch
      %11 = sbr.rel (0) target = $region5
    $region4: #{tpu_custom_call.1} parent=1 // pred_region
      %13 = vsyncadd [#allocation3], 0
      %s14 = sshll.u32 %s0, 4
      %s15 = int_to_ptr.hbm [resolvable:$true] %s14
      %s16 = sshll.u32 [#allocation2], 4
      %s17 = int_to_ptr.vmem [resolvable:$true] %s16
      %22 = dma.hbm_to_vmem [thread:$0]  %s15, 256, %s17, [#allocation3], 128, 128, 8
    $region5: #{tpu_custom_call.1} parent=1 // pred_fallthru
      _
    // Predicated region
    $region6: #{tpu_custom_call.1} parent=1 // pred_check
      _
    $region7: #{tpu_custom_call.1} parent=1 // pred_check_branch
      %24 = sbr.rel (0) target = $region9
    $region8: #{tpu_custom_call.1} parent=1 // pred_region
      _
    $region9: #{tpu_custom_call.1} parent=1 // pred_fallthru
      _
    // Predicated region
    $region10: #{tpu_custom_call.1} parent=1 // pred_check
      _
    $region11: #{tpu_custom_call.1} parent=1 // pred_check_branch
      %26 = sbr.rel (0) target = $region13
    $region12: #{tpu_custom_call.1} parent=1 // pred_region
      _
    $region13: #{tpu_custom_call.1} parent=1 // pred_fallthru
      _
    // Predicated region
    $region14: #{tpu_custom_call.1} parent=1 // pred_check
      _
    $region15: #{tpu_custom_call.1} parent=1 // pred_check_branch
      %28 = sbr.rel (0) target = $region17
    $region16: #{tpu_custom_call.1} parent=1 // pred_region
      %30 = dma.done [#allocation3], 256
    $region17: #{tpu_custom_call.1} parent=1 // pred_fallthru
      _
    %v31 = vld [vmem:[#allocation2] sm:$0xff]
    %v32 = vld [vmem:[#allocation2 + $0x8] sm:$0xff]
    %35 = vst [vmem:[#allocation1] ss:$2 sm:$0xff] %v31
    %v36 = vld.sshfl [vmem:[#allocation1] sm:$0xff pattern:$0x75316420]
    %v37 = vld.sshfl [vmem:[#allocation1 + $0x8] sm:$0xff pattern:$0x75316420]
    %s38 = scalar_lea.vmem [#allocation1], 16
    %39 = vst [vmem:[%s38] ss:$2 sm:$0xff] %v32
    %v40 = vld.sshfl [vmem:[#allocation1 + $0x10] sm:$0xff pattern:$0x75316420]
    %v41 = vld.sshfl [vmem:[#allocation1 + $0x18] sm:$0xff pattern:$0x75316420]
    %vm46 = vcmask 1043456
    %v47 = vsel %vm46, %v36, 0.0
    %v48 = vsel %vm46, %v37, 0.0
    %v49 = vadd.f32 %v47, %v48
    %50 = vadd.xlane.f32.xlu0 %v49
    %v51 = vpop.xlane.xlu0 %50
    %v52 = vsel %vm46, %v40, 0.0
    %v53 = vsel %vm46, %v41, 0.0
    %v54 = vadd.f32 %v52, %v53
    %55 = vadd.xlane.f32.xlu0 %v54
    %v56 = vpop.xlane.xlu0 %55
    %v57 = vsel %vm46, %v51, 0.0
    %v58 = vsel %vm46, %v56, 0.0
    %v59 = vadd.f32 %v57, %v58
    %v60 = vmul.f32 %v59, 0.001953125
    %v63 = vunpack.c.l.s4 839922192
    %v64 = vunpack.c.0.s8 %v63
    %v65 = vperm.slane %v60, %v64
    %v67 = vsub.f32 %v31, %v65
    %v68 = vsub.f32 %v32, %v65
    %v69 = vmul.f32 %v67, %v67
    %v70 = vmul.f32 %v68, %v68
    %73 = vst [vmem:[#allocation1] ss:$2 sm:$0xff] %v69
    %v74 = vld.sshfl [vmem:[#allocation1] sm:$0xff pattern:$0x75316420]
    %v75 = vld.sshfl [vmem:[#allocation1 + $0x8] sm:$0xff pattern:$0x75316420]
    %s76 = scalar_lea.vmem [#allocation1], 16
    %77 = vst [vmem:[%s76] ss:$2 sm:$0xff] %v70
    %v78 = vld.sshfl [vmem:[#allocation1 + $0x10] sm:$0xff pattern:$0x75316420]
    %v79 = vld.sshfl [vmem:[#allocation1 + $0x18] sm:$0xff pattern:$0x75316420]
    %v84 = vsel %vm46, %v74, 0.0
    %v85 = vsel %vm46, %v75, 0.0
    %v86 = vadd.f32 %v84, %v85
    %87 = vadd.xlane.f32.xlu0 %v86
    %v88 = vpop.xlane.xlu0 %87
    %v89 = vsel %vm46, %v78, 0.0
    %v90 = vsel %vm46, %v79, 0.0
    %v91 = vadd.f32 %v89, %v90
    %92 = vadd.xlane.f32.xlu0 %v91
    %v93 = vpop.xlane.xlu0 %92
    %v94 = vsel %vm46, %v88, 0.0
    %v95 = vsel %vm46, %v93, 0.0
    %v96 = vadd.f32 %v94, %v95
    %v97 = vmul.f32 %v96, 0.001953125
    %v98 = vmax.f32 %v97, 0.0
    %v99 = vadd.f32 %v98, 1e-05
    %v100 = vrsqrt.pop %v99
    %v101 = vmul.f32 %v100, %v99
    %v102 = vmul.f32 %v101, %v100
    %v103 = vmul.f32 0.5, %v102
    %v104 = vsub.f32 1.5, %v103
    %v105 = vmul.f32 %v100, %v104
    %vm106 = vweird.f32 %v99
    %vm107 = vweird.f32 %v100
    %vm108 = vmor %vm106, %vm107
    %v109 = vsel %vm108, %v100, %v105
    %v110 = vld [vmem:[%s1] sm:$0xf]
    %v111 = vmul.f32 %v110, %v109
    %v112 = vld [vmem:[%s2] sm:$0xf]
    %v113 = vmul.f32 %v60, %v111
    %v114 = vsub.f32 %v112, %v113
    %116 = vset.pattern.permute.xlu0 0
    %117 = vperm.xlu0 %116, %v111
    %v118 = vpop.permute.xlu0 %117
    %v120 = vunpack.c.l.s4 839922192
    %v121 = vunpack.c.0.s8 %v120
    %v122 = vperm.slane %v118, %v121
    %v124 = vmul.f32 %v31, %v122
    %v125 = vmul.f32 %v32, %v122
    %127 = vset.pattern.permute.xlu0 0
    %128 = vperm.xlu0 %127, %v114
    %v129 = vpop.permute.xlu0 %128
    %v131 = vunpack.c.l.s4 839922192
    %v132 = vunpack.c.0.s8 %v131
    %v133 = vperm.slane %v129, %v132
    %v135 = vadd.f32 %v124, %v133
    %v136 = vadd.f32 %v125, %v133
    %137 = vst [vmem:[#allocation5] sm:$0xff] %v135
    %138 = vst [vmem:[#allocation5 + $0x8] sm:$0xff] %v136
    // Predicated region
    $region18: #{tpu_custom_call.1} parent=1 // pred_check
      _
    $region19: #{tpu_custom_call.1} parent=1 // pred_check_branch
      %140 = sbr.rel (0) target = $region21
    $region20: #{tpu_custom_call.1} parent=1 // pred_region
      %142 = vsyncadd [#allocation4], 0
      %s143 = sshll.u32 [#allocation5], 4
      %s144 = int_to_ptr.vmem [resolvable:$true] %s143
      %s145 = sshll.u32 %s3, 4
      %s146 = int_to_ptr.hbm [resolvable:$true] %s145
      %151 = dma.vmem_to_hbm [thread:$0]  %s144, 256, %s146, [#allocation4], 128, 128, 8
    $region21: #{tpu_custom_call.1} parent=1 // pred_fallthru
      _
    // Predicated region
    $region22: #{tpu_custom_call.1} parent=1 // pred_check
      _
    $region23: #{tpu_custom_call.1} parent=1 // pred_check_branch
      %153 = sbr.rel (0) target = $region25
    $region24: #{tpu_custom_call.1} parent=1 // pred_region
      %155 = dma.done [#allocation4], 256
    $region25: #{tpu_custom_call.1} parent=1 // pred_fallthru
      _
    %156 = vsyncpa [#allocation3], 1
    %157 = vsyncpa [#allocation4], 1

</llo_original>
